<compile_context>
chip_gen: v6e
topology: v6e:2x2x1
jax: 0.10.0
libtpu: 0.0.40
codegen_flags: <defaults>
</compile_context>

<pallas_src>
import jax
import jax.numpy as jnp
from jax.experimental import pallas as pl
from jax.experimental.pallas import tpu as pltpu


def _pool_dwconv_kernel(x_ref, pm_ref, s_ref, b_ref, o_ref):
    """Fused AvgPool2d(2,2) + depthwise 1x1 conv on one (tile, H*W) row block.

    x_ref : (T, H*W)      flattened input rows (one row = one (n, c) image plane)
    pm_ref: (H*W, Ho*Wo)  constant pooling matrix (0 / 0.25), VMEM-resident
    s_ref : (Rpad, 1)     per-row (= per (n, c)) conv weight, grid-resident
    b_ref : (Rpad, 1)     per-row bias, grid-resident
    o_ref : (T, Ho*Wo)
    """
    t = o_ref.shape[0]
    start = pl.program_id(0) * t
    if t % 8 == 0:
        start = pl.multiple_of(start, 8)

    # Whole 2x2 window + 1/4 factor reduced in a single MXU op (lane-dense operands).
    pooled = jnp.dot(x_ref[...], pm_ref[...], preferred_element_type=jnp.float32)

    scale = s_ref[pl.ds(start, t), :]
    bias = b_ref[pl.ds(start, t), :]
    o_ref[...] = (pooled * scale + bias).astype(o_ref.dtype)


def _pick_row_tile(rtot, hw, row_tile=None):
    """Output-row tile: full extent, or a multiple of 8 targeting ~2 MiB useful input/step."""
    if row_tile is None:
        row_tile = max(8, (2 << 20) // max(1, hw * 4))
    if row_tile >= rtot:
        return rtot
    return max(8, row_tile - row_tile % 8)


def lenet5_orig_s_forward(x, weight, bias, *, row_tile=None):
    """x: (N, C, H, W) f32; weight: (C, 1, 1, 1) depthwise Conv2d weight; bias: (C,)."""
    N, C, H, W = x.shape
    Ho, Wo = H // 2, W // 2                      # AvgPool2d(2,2) floors odd H/W
    HW, HoWo = H * W, Ho * Wo
    Rtot = N * C

    # Zero-copy 2-D view: merges leading (N,C) and trailing (H,W) dims of a contiguous array.
    x2 = x.reshape(Rtot, HW)

    # Pooling matrix: pm[h*W + w, r*Wo + c] = 0.25 iff (h//2, w//2) == (r, c).
    # Rows/cols beyond 2*Ho / 2*Wo map to nothing -> odd sizes handled with no crop copy.
    h_i = jnp.arange(H)[:, None, None, None]
    w_i = jnp.arange(W)[None, :, None, None]
    r_i = jnp.arange(Ho)[None, None, :, None]
    c_i = jnp.arange(Wo)[None, None, None, :]
    pm = (0.25 * ((h_i // 2 == r_i) & (w_i // 2 == c_i))).astype(jnp.float32)
    pm = pm.reshape(HW, HoWo)

    tile = _pick_row_tile(Rtot, HW, row_tile)
    grid_n = pl.cdiv(Rtot, tile)
    Rpad = grid_n * tile

    # Per-(n, c) scale/bias, kept in f32, padded to the grid extent so in-kernel pl.ds
    # slicing never reads out of bounds. Tiny (Rpad floats each), fetched once (resident).
    s_rows = jnp.broadcast_to(weight.reshape(1, C).astype(jnp.float32), (N, C)).reshape(Rtot)
    b_rows = jnp.broadcast_to(bias.reshape(1, C).astype(jnp.float32), (N, C)).reshape(Rtot)
    if Rpad != Rtot:
        s_rows = jnp.pad(s_rows, (0, Rpad - Rtot))
        b_rows = jnp.pad(b_rows, (0, Rpad - Rtot))
    s_rows = s_rows.reshape(Rpad, 1)
    b_rows = b_rows.reshape(Rpad, 1)

    out2 = pl.pallas_call(
        _pool_dwconv_kernel,
        out_shape=jax.ShapeDtypeStruct((Rtot, HoWo), x.dtype),
        grid=(grid_n,),
        in_specs=[
            pl.BlockSpec((tile, HW), lambda i: (i, 0)),      # streamed input rows
            pl.BlockSpec((HW, HoWo), lambda i: (0, 0)),      # pooling matrix (resident)
            pl.BlockSpec((Rpad, 1), lambda i: (0, 0)),       # per-row scale (resident)
            pl.BlockSpec((Rpad, 1), lambda i: (0, 0)),       # per-row bias (resident)
        ],
        out_specs=pl.BlockSpec((tile, HoWo), lambda i: (i, 0)),
        compiler_params=pltpu.CompilerParams(
            dimension_semantics=("parallel",),   # pipelines + shards across v7x's 2 TCs
        ),
    )(x2, pm, s_rows, b_rows)

    return out2.reshape(N, C, Ho, Wo)


if __name__ == "__main__":
    key = jax.random.PRNGKey(0)

    def run_case(n, c, h, w, case_key, row_tile=None):
        kx, kw, kb = jax.random.split(case_key, 3)
        x = jax.random.normal(kx, (n, c, h, w), dtype=jnp.float32)
        weight = jax.random.normal(kw, (c, 1, 1, 1), dtype=jnp.float32) * 0.5
        bias = jax.random.normal(kb, (c,), dtype=jnp.float32) * 0.1

        out = jax.block_until_ready(
            lenet5_orig_s_forward(x, weight, bias, row_tile=row_tile)
        )

        ho, wo = h // 2, w // 2
        ref = x[:, :, : 2 * ho, : 2 * wo].reshape(n, c, ho, 2, wo, 2).mean(axis=(3, 5))
        ref = ref * weight.reshape(1, c, 1, 1) + bias.reshape(1, c, 1, 1)

        assert out.shape == (n, c, ho, wo), out.shape
        # Tolerance leaves headroom for DEFAULT-precision MXU rounding of the f32 matmul.
        max_err = float(jnp.max(jnp.abs(out - ref)))
        assert jnp.allclose(out, ref, atol=1e-2, rtol=1e-2), f"max_err={max_err}"
        return out

    # Small shape consistent with the module (NCHW): single-block grid.
    run_case(2, 4, 16, 16, jax.random.fold_in(key, 0))
    # Larger case with an explicit small row_tile to exercise the multi-step parallel grid.
    run_case(4, 8, 32, 32, jax.random.fold_in(key, 1), row_tile=8)
    # Odd spatial dims: floor-pooling handled inside the pooling matrix (no crop copy).
    out = run_case(2, 4, 15, 17, jax.random.fold_in(key, 2))
    _ = jax.block_until_ready(out)
    print("KERNEL_OK")
</pallas_src>

<mosaic_0001>
module attributes {stable_mosaic.version = 11 : i64} {
  func.func @_pool_dwconv_kernel(%arg0: i32, %arg1: memref<8x256xf32, #tpu.memory_space<vmem>>, %arg2: memref<256x64xf32, #tpu.memory_space<vmem>>, %arg3: memref<8x1xf32, #tpu.memory_space<vmem>>, %arg4: memref<8x1xf32, #tpu.memory_space<vmem>>, %arg5: memref<8x64xf32, #tpu.memory_space<vmem>>) attributes {dimension_semantics = [#tpu.dimension_semantics<parallel>], iteration_bounds = array<i64: 1>, scalar_prefetch = 0 : i64, scratch_operands = 0 : i64, tpu.core_type = #tpu.core_type<tc>, window_params = [{transform_indices = @transform_0, window_bounds = array<i64: 8, 256>}, {pipeline_mode = #tpu.pipeline_mode<synchronous>, transform_indices = @transform_1, window_bounds = array<i64: 256, 64>}, {pipeline_mode = #tpu.pipeline_mode<synchronous>, transform_indices = @transform_2, window_bounds = array<i64: 8, 1>}, {pipeline_mode = #tpu.pipeline_mode<synchronous>, transform_indices = @transform_3, window_bounds = array<i64: 8, 1>}, {transform_indices = @transform_4, window_bounds = array<i64: 8, 64>}]} {
    %c8_i32 = arith.constant 8 : i32
    %0 = arith.muli %arg0, %c8_i32 : i32
    %1 = tpu.assume_multiple %0, 8 : i32
    %c0 = arith.constant 0 : index
    %c0_0 = arith.constant 0 : index
    %2 = vector.load %arg1[%c0, %c0_0] : memref<8x256xf32, #tpu.memory_space<vmem>>, vector<8x256xf32>
    %c0_1 = arith.constant 0 : index
    %c0_2 = arith.constant 0 : index
    %3 = vector.load %arg2[%c0_1, %c0_2] : memref<256x64xf32, #tpu.memory_space<vmem>>, vector<256x64xf32>
    %cst = arith.constant dense<0.000000e+00> : vector<8x64xf32>
    %4 = tpu.matmul %2, %3, %cst {dimension_numbers = #tpu.dot_dimension_numbers<[1], [0], [0], [1], [0, 0, 1, 1], [], []>} : vector<8x256xf32>, vector<256x64xf32>, vector<8x64xf32> -> vector<8x64xf32>
    %5 = arith.index_cast %1 : i32 to index
    %c0_3 = arith.constant 0 : index
    %6 = vector.load %arg3[%5, %c0_3] : memref<8x1xf32, #tpu.memory_space<vmem>>, vector<8x1xf32>
    %7 = arith.index_cast %1 : i32 to index
    %c0_4 = arith.constant 0 : index
    %8 = vector.load %arg4[%7, %c0_4] : memref<8x1xf32, #tpu.memory_space<vmem>>, vector<8x1xf32>
    %9 = vector.broadcast %6 : vector<8x1xf32> to vector<8x64xf32>
    %10 = arith.mulf %4, %9 : vector<8x64xf32>
    %11 = vector.broadcast %8 : vector<8x1xf32> to vector<8x64xf32>
    %12 = arith.addf %10, %11 : vector<8x64xf32>
    %c0_5 = arith.constant 0 : index
    %c0_6 = arith.constant 0 : index
    %13 = vector.load %arg5[%c0_5, %c0_6] : memref<8x64xf32, #tpu.memory_space<vmem>>, vector<8x64xf32>
    tpu.vector_store %arg5[%c0_5, %c0_6], %12 {strides = array<i32>} : memref<8x64xf32, #tpu.memory_space<vmem>>, vector<8x64xf32>,
    return
  }
  func.func @transform_0(%arg0: i32) -> (i32, i32) {
    %c0_i32 = arith.constant 0 : i32
    %c0_i32_0 = arith.constant 0 : i32
    return %arg0, %c0_i32 : i32, i32
  }
  func.func @transform_1(%arg0: i32) -> (i32, i32) {
    %c0_i32 = arith.constant 0 : i32
    %c0_i32_0 = arith.constant 0 : i32
    %c0_i32_1 = arith.constant 0 : i32
    return %c0_i32, %c0_i32_0 : i32, i32
  }
  func.func @transform_2(%arg0: i32) -> (i32, i32) {
    %c0_i32 = arith.constant 0 : i32
    %c0_i32_0 = arith.constant 0 : i32
    %c0_i32_1 = arith.constant 0 : i32
    return %c0_i32, %c0_i32_0 : i32, i32
  }
  func.func @transform_3(%arg0: i32) -> (i32, i32) {
    %c0_i32 = arith.constant 0 : i32
    %c0_i32_0 = arith.constant 0 : i32
    %c0_i32_1 = arith.constant 0 : i32
    return %c0_i32, %c0_i32_0 : i32, i32
  }
  func.func @transform_4(%arg0: i32) -> (i32, i32) {
    %c0_i32 = arith.constant 0 : i32
    %c0_i32_0 = arith.constant 0 : i32
    return %arg0, %c0_i32 : i32, i32
  }
}

</mosaic_0001>

<llo_original>
// kernel: tpu_custom_call.1
$region0: #{tpu_custom_call.1}
  #allocation0 [shape = 'u32[]', space=smem, size = 0x4, offset = 0x4, fixed_abs, tag = 'smem constant byte address 0x4 - core index']
  #allocation1 [shape = 'u32[144,128]{1,0:T(1,128)}', space=vmem, size = 0x12000, scoped, tag = 'internal scratch']
  %s0 = inlined_call_operand.vmem [shape: f32[8,256], index: 0, kind: input, shape index: {}]
  %s1 = inlined_call_operand.vmem [shape: f32[256,64], index: 1, kind: input, shape index: {}]
  %s2 = inlined_call_operand.vmem [shape: f32[8,1], index: 2, kind: input, shape index: {}]
  %s3 = inlined_call_operand.vmem [shape: f32[8,1], index: 3, kind: input, shape index: {}]
  %s4 = inlined_call_operand.hbm [shape: f32[8,64], index: 4, kind: output, shape index: {}]
  %s5 = sld [smem:[#allocation0]]
  $region26: #{tpu_custom_call.1} parent=0
    _
  %s7 = ssub.s32 1, %s5
  %s8 = scalar_select 0, %s7, %s5
  $region1: #{tpu_custom_call.1} parent=0
    #allocation2 [shape = 'u8[4096]{0}', space=vmem, size = 0x1000, scoped, tag = 'output window, operand 0, single buffered']
    #allocation3 [shape = 's32[1]{0}', space=sflag, size = 0x4, scoped, tag = 'scoped memory for tpu_custom_call.1']
    %9 = vsyncpa [#allocation3], 0
    // Predicated region
    $region2: #{tpu_custom_call.1} parent=1 // pred_check
      _
    $region3: #{tpu_custom_call.1} parent=1 // pred_check_branch
      %11 = sbr.rel (0) target = $region5
    $region4: #{tpu_custom_call.1} parent=1 // pred_region
      _
    $region5: #{tpu_custom_call.1} parent=1 // pred_fallthru
      _
    // Predicated region
    $region6: #{tpu_custom_call.1} parent=1 // pred_check
      _
    $region7: #{tpu_custom_call.1} parent=1 // pred_check_branch
      %13 = sbr.rel (0) target = $region9
    $region8: #{tpu_custom_call.1} parent=1 // pred_region
      _
    $region9: #{tpu_custom_call.1} parent=1 // pred_fallthru
      _
    // Predicated region
    $region10: #{tpu_custom_call.1} parent=1 // pred_check
      _
    $region11: #{tpu_custom_call.1} parent=1 // pred_check_branch
      %15 = sbr.rel (0) target = $region13
    $region12: #{tpu_custom_call.1} parent=1 // pred_region
      _
    $region13: #{tpu_custom_call.1} parent=1 // pred_fallthru
      _
    // Predicated region
    $region14: #{tpu_custom_call.1} parent=1 // pred_check
      _
    $region15: #{tpu_custom_call.1} parent=1 // pred_check_branch
      %17 = sbr.rel (0) target = $region17
    $region16: #{tpu_custom_call.1} parent=1 // pred_region
      _
    $region17: #{tpu_custom_call.1} parent=1 // pred_fallthru
      _
    %s18 = smul.u32 0, 8
    %v19 = vld [vmem:[%s0] sm:$0xff]
    %v20 = vld [vmem:[%s0 + $0x8] sm:$0xff]
    %v21 = vld [vmem:[%s1] sm:$0xff]
    %v22 = vld [vmem:[%s1 + $0x8] sm:$0xff]
    %v23 = vld [vmem:[%s1 + $0x10] sm:$0xff]
    %v24 = vld [vmem:[%s1 + $0x18] sm:$0xff]
    %v25 = vld [vmem:[%s1 + $0x20] sm:$0xff]
    %v26 = vld [vmem:[%s1 + $0x28] sm:$0xff]
    %v27 = vld [vmem:[%s1 + $0x30] sm:$0xff]
    %v28 = vld [vmem:[%s1 + $0x38] sm:$0xff]
    %v29 = vld [vmem:[%s1 + $0x40] sm:$0xff]
    %v30 = vld [vmem:[%s1 + $0x48] sm:$0xff]
    %v31 = vld [vmem:[%s1 + $0x50] sm:$0xff]
    %v32 = vld [vmem:[%s1 + $0x58] sm:$0xff]
    %v33 = vld [vmem:[%s1 + $0x60] sm:$0xff]
    %v34 = vld [vmem:[%s1 + $0x68] sm:$0xff]
    %v35 = vld [vmem:[%s1 + $0x70] sm:$0xff]
    %v36 = vld [vmem:[%s1 + $0x78] sm:$0xff]
    %v37 = vld [vmem:[%s1 + $0x80] sm:$0xff]
    %v38 = vld [vmem:[%s1 + $0x88] sm:$0xff]
    %v39 = vld [vmem:[%s1 + $0x90] sm:$0xff]
    %v40 = vld [vmem:[%s1 + $0x98] sm:$0xff]
    %v41 = vld [vmem:[%s1 + $0xa0] sm:$0xff]
    %v42 = vld [vmem:[%s1 + $0xa8] sm:$0xff]
    %v43 = vld [vmem:[%s1 + $0xb0] sm:$0xff]
    %v44 = vld [vmem:[%s1 + $0xb8] sm:$0xff]
    %v45 = vld [vmem:[%s1 + $0xc0] sm:$0xff]
    %v46 = vld [vmem:[%s1 + $0xc8] sm:$0xff]
    %v47 = vld [vmem:[%s1 + $0xd0] sm:$0xff]
    %v48 = vld [vmem:[%s1 + $0xd8] sm:$0xff]
    %v49 = vld [vmem:[%s1 + $0xe0] sm:$0xff]
    %v50 = vld [vmem:[%s1 + $0xe8] sm:$0xff]
    %v51 = vld [vmem:[%s1 + $0xf0] sm:$0xff]
    %v52 = vld [vmem:[%s1 + $0xf8] sm:$0xff]
    %53 = vmatprep.subr.mxu0 0.0
    %54 = vmatpush1.msra.mxu0 %v36
    %55 = vmatprep.subr.mxu0 0.0
    %56 = vmatpush1.msra.mxu0 %v35
    %57 = vmatprep.subr.mxu0 0.0
    %58 = vmatpush1.msra.mxu0 %v34
    %59 = vmatprep.subr.mxu0 0.0
    %60 = vmatpush1.msra.mxu0 %v33
    %61 = vmatprep.subr.mxu0 0.0
    %62 = vmatpush1.msra.mxu0 %v32
    %63 = vmatprep.subr.mxu0 0.0
    %64 = vmatpush1.msra.mxu0 %v31
    %65 = vmatprep.subr.mxu0 0.0
    %66 = vmatpush1.msra.mxu0 %v30
    %67 = vmatprep.subr.mxu0 0.0
    %68 = vmatpush1.msra.mxu0 %v29
    %69 = vmatprep.subr.mxu0 0.0
    %70 = vmatpush1.msra.mxu0 %v28
    %71 = vmatprep.subr.mxu0 0.0
    %72 = vmatpush1.msra.mxu0 %v27
    %73 = vmatprep.subr.mxu0 0.0
    %74 = vmatpush1.msra.mxu0 %v26
    %75 = vmatprep.subr.mxu0 0.0
    %76 = vmatpush1.msra.mxu0 %v25
    %77 = vmatprep.subr.mxu0 0.0
    %78 = vmatpush1.msra.mxu0 %v24
    %79 = vmatprep.subr.mxu0 0.0
    %80 = vmatpush1.msra.mxu0 %v23
    %81 = vmatprep.subr.mxu0 0.0
    %82 = vmatpush1.msra.mxu0 %v22
    %83 = vmatprep.subr.mxu0 0.0
    %84 = vmatpush1.msra.mxu0 %v21
    %85 = vmatprep.subr.mxu0 0.0
    %86 = vmatpush2.msra.mxu0 %v52
    %87 = vmatprep.subr.mxu0 0.0
    %88 = vmatpush2.msra.mxu0 %v51
    %89 = vmatprep.subr.mxu0 0.0
    %90 = vmatpush2.msra.mxu0 %v50
    %91 = vmatprep.subr.mxu0 0.0
    %92 = vmatpush2.msra.mxu0 %v49
    %93 = vmatprep.subr.mxu0 0.0
    %94 = vmatpush2.msra.mxu0 %v48
    %95 = vmatprep.subr.mxu0 0.0
    %96 = vmatpush2.msra.mxu0 %v47
    %97 = vmatprep.subr.mxu0 0.0
    %98 = vmatpush2.msra.mxu0 %v46
    %99 = vmatprep.subr.mxu0 0.0
    %100 = vmatpush2.msra.mxu0 %v45
    %101 = vmatprep.subr.mxu0 0.0
    %102 = vmatpush2.msra.mxu0 %v44
    %103 = vmatprep.subr.mxu0 0.0
    %104 = vmatpush2.msra.mxu0 %v43
    %105 = vmatprep.subr.mxu0 0.0
    %106 = vmatpush2.msra.mxu0 %v42
    %107 = vmatprep.subr.mxu0 0.0
    %108 = vmatpush2.msra.mxu0 %v41
    %109 = vmatprep.subr.mxu0 0.0
    %110 = vmatpush2.msra.mxu0 %v40
    %111 = vmatprep.subr.mxu0 0.0
    %112 = vmatpush2.msra.mxu0 %v39
    %113 = vmatprep.subr.mxu0 0.0
    %114 = vmatpush2.msra.mxu0 %v38
    %115 = vmatprep.subr.mxu0 0.0
    %116 = vmatpush2.msra.mxu0 %v37
    %117 = vmatprep.mubr.f32.mxu0 %v20
    %118 = vmatmul.mubr.f32.gmra.mxu0 %v19
    %v119 = vpop.f32.mrf.mxu0
    %v120 = vadd.f32 0.0, %v119
    %v121 = vpop.f32.mrf.mxu0
    %122 = vdwg.mxu0
    %s123 = scalar_lea.vmem %s2, %s18
    %v124 = vld [vmem:[%s123] sm:$0xff]
    %s125 = scalar_lea.vmem %s3, %s18
    %v126 = vld [vmem:[%s125] sm:$0xff]
    %128 = vset.pattern.permute.xlu0 0
    %129 = vperm.xlu0 %128, %v124
    %v130 = vpop.permute.xlu0 %129
    %v132 = vmul.f32 %v120, %v130
    %134 = vset.pattern.permute.xlu0 0
    %135 = vperm.xlu0 %134, %v126
    %v136 = vpop.permute.xlu0 %135
    %v138 = vadd.f32 %v132, %v136
    %vm139 = vcmask 523264
    %140 = vst.msk [vmem:[#allocation2] sm:$0xff] %vm139, %v138
    // Predicated region
    $region18: #{tpu_custom_call.1} parent=1 // pred_check
      _
    $region19: #{tpu_custom_call.1} parent=1 // pred_check_branch
      %142 = sbr.rel (0) target = $region21
    $region20: #{tpu_custom_call.1} parent=1 // pred_region
      %s144 = ssub.s32 128, 128
      %145 = vsyncadd [#allocation3], %s144
      %s147 = sshll.u32 [#allocation2], 4
      %s148 = int_to_ptr.vmem [resolvable:$true] %s147
      %150 = dma.vmem_to_hbm [thread:$0]  %s148, 128, %s4, [#allocation3]
    $region21: #{tpu_custom_call.1} parent=1 // pred_fallthru
      _
    // Predicated region
    $region22: #{tpu_custom_call.1} parent=1 // pred_check
      _
    $region23: #{tpu_custom_call.1} parent=1 // pred_check_branch
      %152 = sbr.rel (0) target = $region25
    $region24: #{tpu_custom_call.1} parent=1 // pred_region
      %153 = dma.done [#allocation3], 128
    $region25: #{tpu_custom_call.1} parent=1 // pred_fallthru
      _
    %154 = vsyncpa [#allocation3], 1

</llo_original>
